<compile_context>
chip_gen: v5e
topology: v5e:2x2
jax: 0.10.0
libtpu: 0.0.40
codegen_flags: <defaults>
</compile_context>

<pallas_src>
import functools

import jax
import jax.numpy as jnp
from jax import lax
from jax.experimental import pallas as pl
from jax.experimental.pallas import tpu as pltpu


def _mixup_loss_kernel(logits_ref, target_ref, out_ref, acc_ref, *, true_b, tile_b):
    """One batch tile per grid step; SMEM accumulators persist across steps."""
    pid = pl.program_id(0)
    nsteps = pl.num_programs(0)

    @pl.when(pid == 0)
    def _init():
        acc_ref[0] = 0.0  # sum of nll1 over valid rows
        acc_ref[1] = 0.0  # sum of nll2 over valid rows
        acc_ref[2] = 0.0  # sum of lambda over valid rows

    # Load native-dtype tile, do all math in f32 (v5e has no bf16 VPU/EUP path).
    x = logits_ref[...].astype(jnp.float32)    # (TB, C)
    tgt = target_ref[...].astype(jnp.float32)  # (TB, 3)
    tb, c = x.shape

    # Mask rows of a (possibly padded) remainder tile; also zero padded logits
    # so garbage data can't inject NaN/Inf through exp().
    row = lax.broadcasted_iota(jnp.int32, (tb, 1), 0)
    valid = (pid * tile_b + row) < true_b      # (TB, 1) bool
    x = jnp.where(valid, x, 0.0)

    # Numerically-stable log-sum-exp per row (no materialized log_softmax).
    m = jnp.max(x, axis=-1, keepdims=True)                                  # (TB, 1)
    lse = m + jnp.log(jnp.sum(jnp.exp(x - m), axis=-1, keepdims=True))      # (TB, 1)

    # Gather logits of the two mixed classes via one-hot masks
    # (class indices travel as f32 -> exact for indices < 2^24).
    cls = lax.broadcasted_iota(jnp.int32, (tb, c), 1)                       # (TB, C)
    t1 = tgt[:, 0:1].astype(jnp.int32)                                      # (TB, 1)
    t2 = tgt[:, 1:2].astype(jnp.int32)                                      # (TB, 1)
    lam = tgt[:, 2:3]                                                       # (TB, 1)

    sel1 = jnp.sum(jnp.where(cls == t1, x, 0.0), axis=-1, keepdims=True)    # x[b, t1]
    sel2 = jnp.sum(jnp.where(cls == t2, x, 0.0), axis=-1, keepdims=True)    # x[b, t2]

    vmask = valid.astype(jnp.float32)
    acc_ref[0] += jnp.sum((lse - sel1) * vmask)
    acc_ref[1] += jnp.sum((lse - sel2) * vmask)
    acc_ref[2] += jnp.sum(lam * vmask)

    @pl.when(pid == nsteps - 1)
    def _finalize():
        inv_b = 1.0 / float(true_b)
        loss1 = acc_ref[0] * inv_b
        loss2 = acc_ref[1] * inv_b
        lam_mean = acc_ref[2] * inv_b
        out_ref[0, 0] = loss1 * lam_mean + loss2 * (1.0 - lam_mean)


def _pick_batch_tile(b, c, itemsize, budget_bytes=16 * (1 << 20), max_tile=1024):
    """Largest multiple-of-8 batch tile whose double-buffered logits fit budget."""
    per_row = max(1, c * itemsize)
    tile = budget_bytes // (2 * per_row)
    tile = max(8, min(max_tile, (tile // 8) * 8))
    b_padded = ((b + 7) // 8) * 8
    return min(tile, b_padded)


def mixup_softmax_loss(logits, target):
    """logits: (B, C) float (any dtype); target: (B, 3) f32 = (cls1, cls2, lambda)."""
    b, c = logits.shape
    target = target.astype(jnp.float32)

    itemsize = jnp.dtype(logits.dtype).itemsize
    tile_b = _pick_batch_tile(b, c, itemsize)
    grid = (pl.cdiv(b, tile_b),)

    # Double-buffered logits tile + target tile + headroom; stay well under the
    # v7x 64 MiB physical / 32 MiB scoped ceilings.
    vmem_limit = int(
        min(96 * (1 << 20),
            max(8 * (1 << 20), 4 * tile_b * c * itemsize + 2 * (1 << 20)))
    )

    cost = pl.CostEstimate(
        flops=6 * b * c,
        transcendentals=b * c,
        bytes_accessed=b * c * itemsize + b * 3 * 4 + 4,
    )

    kernel = functools.partial(_mixup_loss_kernel, true_b=b, tile_b=tile_b)

    out = pl.pallas_call(
        kernel,
        out_shape=jax.ShapeDtypeStruct((1, 1), jnp.float32),
        grid=grid,
        in_specs=[
            pl.BlockSpec((tile_b, c), lambda i: (i, 0)),
            pl.BlockSpec((tile_b, 3), lambda i: (i, 0)),
        ],
        out_specs=pl.BlockSpec(memory_space=pltpu.MemorySpace.SMEM),
        scratch_shapes=[pltpu.SMEM((3,), jnp.float32)],
        compiler_params=pltpu.CompilerParams(
            dimension_semantics=("arbitrary",),  # shared accumulator across steps
            vmem_limit_bytes=vmem_limit,
        ),
        cost_estimate=cost,
    )(logits, target)
    return out[0, 0]


def _reference(logits, target):
    # Pure-JAX reference matching the PyTorch module.
    logits = logits.astype(jnp.float32)
    logp = jax.nn.log_softmax(logits, axis=-1)
    t1 = target[:, 0].astype(jnp.int32)
    t2 = target[:, 1].astype(jnp.int32)
    lam = target[:, 2].astype(jnp.float32)
    nll1 = -jnp.take_along_axis(logp, t1[:, None], axis=-1)[:, 0]
    nll2 = -jnp.take_along_axis(logp, t2[:, None], axis=-1)[:, 0]
    loss1 = jnp.mean(nll1)
    loss2 = jnp.mean(nll2)
    return jnp.mean(loss1 * lam + loss2 * (1.0 - lam))


def _make_inputs(key, b, c, dtype):
    k_logits, k_t1, k_t2, k_lam = jax.random.split(key, 4)
    logits = jax.random.normal(k_logits, (b, c), dtype=jnp.float32).astype(dtype)
    cls1 = jax.random.randint(k_t1, (b,), 0, c)
    cls2 = jax.random.randint(k_t2, (b,), 0, c)
    lam = jax.random.uniform(k_lam, (b,), dtype=jnp.float32)
    target = jnp.stack(
        [cls1.astype(jnp.float32), cls2.astype(jnp.float32), lam], axis=1
    )
    return logits, target


if __name__ == "__main__":
    key = jax.random.PRNGKey(0)
    k1, k2, k3 = jax.random.split(key, 3)

    # Case 1: small f32 batch (single tile), tight tolerance.
    logits, target = _make_inputs(k1, 8, 32, jnp.float32)
    loss = mixup_softmax_loss(logits, target)
    jax.block_until_ready(loss)
    ref = _reference(logits, target)
    assert jnp.allclose(loss, ref, atol=1e-5, rtol=1e-5), (loss, ref)

    # Case 2: non-multiple-of-8 batch -> exercises remainder masking across a
    # multi-step grid (TB=8, grid=(2,)).
    logits2, target2 = _make_inputs(k2, 13, 40, jnp.float32)
    loss2 = mixup_softmax_loss(logits2, target2)
    jax.block_until_ready(loss2)
    ref2 = _reference(logits2, target2)
    assert jnp.allclose(loss2, ref2, atol=1e-5, rtol=1e-5), (loss2, ref2)

    # Case 3: native bf16 logits stream through the kernel (no wrapper upcast).
    logits3, target3 = _make_inputs(k3, 16, 64, jnp.bfloat16)
    loss3 = mixup_softmax_loss(logits3, target3)
    jax.block_until_ready(loss3)
    ref3 = _reference(logits3.astype(jnp.float32), target3)
    assert jnp.allclose(loss3, ref3, atol=2e-2, rtol=2e-2), (loss3, ref3)

    print("KERNEL_OK")
</pallas_src>

<mosaic_0001>
module attributes {stable_mosaic.version = 11 : i64} {
  func.func @_mixup_loss_kernel(%arg0: i32, %arg1: memref<8x32xf32, #tpu.memory_space<vmem>>, %arg2: memref<8x3xf32, #tpu.memory_space<vmem>>, %arg3: memref<1x1xf32, #tpu.memory_space<smem>>, %arg4: memref<3xf32, #tpu.memory_space<smem>>) attributes {dimension_semantics = [#tpu.dimension_semantics<arbitrary>], iteration_bounds = array<i64: 1>, scalar_prefetch = 0 : i64, scratch_operands = 1 : i64, tpu.core_type = #tpu.core_type<tc>, window_params = [{transform_indices = @transform_0, window_bounds = array<i64: 8, 32>}, {transform_indices = @transform_1, window_bounds = array<i64: 8, 3>}, {transform_indices = @transform_2, window_bounds = array<i64: 1, 1>}]} {
    %c0_i32 = arith.constant 0 : i32
    %0 = arith.cmpi eq, %arg0, %c0_i32 : i32
    %1 = arith.extui %0 : i1 to i32
    %c0_i32_0 = arith.constant 0 : i32
    %2 = arith.cmpi ne, %1, %c0_i32_0 : i32
    scf.if %2 {
      %cst_20 = arith.constant 0.000000e+00 : f32
      %c0_21 = arith.constant 0 : index
      %73 = memref.load %arg4[%c0_21] : memref<3xf32, #tpu.memory_space<smem>>
      memref.store %cst_20, %arg4[%c0_21] : memref<3xf32, #tpu.memory_space<smem>>
      %cst_22 = arith.constant 0.000000e+00 : f32
      %c1_23 = arith.constant 1 : index
      %74 = memref.load %arg4[%c1_23] : memref<3xf32, #tpu.memory_space<smem>>
      memref.store %cst_22, %arg4[%c1_23] : memref<3xf32, #tpu.memory_space<smem>>
      %cst_24 = arith.constant 0.000000e+00 : f32
      %c2_25 = arith.constant 2 : index
      %75 = memref.load %arg4[%c2_25] : memref<3xf32, #tpu.memory_space<smem>>
      memref.store %cst_24, %arg4[%c2_25] : memref<3xf32, #tpu.memory_space<smem>>
    } else {
    }
    %c0 = arith.constant 0 : index
    %c0_1 = arith.constant 0 : index
    %3 = vector.load %arg1[%c0, %c0_1] : memref<8x32xf32, #tpu.memory_space<vmem>>, vector<8x32xf32>
    %c0_2 = arith.constant 0 : index
    %c0_3 = arith.constant 0 : index
    %4 = vector.load %arg2[%c0_2, %c0_3] : memref<8x3xf32, #tpu.memory_space<vmem>>, vector<8x3xf32>
    %5 = tpu.iota {dimensions = array<i32: 0>} : vector<8x1xi32>
    %c8_i32 = arith.constant 8 : i32
    %6 = arith.muli %arg0, %c8_i32 : i32
    %7 = vector.broadcast %6 : i32 to vector<8x1xi32>
    %8 = arith.addi %7, %5 : vector<8x1xi32>
    %c8_i32_4 = arith.constant 8 : i32
    %9 = vector.broadcast %c8_i32_4 : i32 to vector<8x1xi32>
    %10 = arith.cmpi slt, %8, %9 : vector<8x1xi32>
    %cst = arith.constant 0.000000e+00 : f32
    %11 = vector.shape_cast %10 : vector<8x1xi1> to vector<8x1xi1>
    %12 = vector.broadcast %11 : vector<8x1xi1> to vector<8x32xi1>
    %13 = vector.broadcast %cst : f32 to vector<8x32xf32>
    %14 = arith.select %12, %3, %13 : vector<8x32xi1>, vector<8x32xf32>
    %cst_5 = arith.constant dense<0xFF800000> : vector<8xf32>
    %15 = vector.multi_reduction <maximumf>, %14, %cst_5 [1] : vector<8x32xf32> to vector<8xf32>
    %16 = vector.shape_cast %15 : vector<8xf32> to vector<8x1xf32>
    %17 = vector.broadcast %16 : vector<8x1xf32> to vector<8x32xf32>
    %18 = arith.subf %14, %17 : vector<8x32xf32>
    %19 = math.exp %18 : vector<8x32xf32>
    %cst_6 = arith.constant dense<0.000000e+00> : vector<8xf32>
    %20 = vector.multi_reduction <add>, %19, %cst_6 [1] : vector<8x32xf32> to vector<8xf32>
    %21 = vector.shape_cast %20 : vector<8xf32> to vector<8x1xf32>
    %22 = math.log %21 : vector<8x1xf32>
    %23 = arith.addf %16, %22 : vector<8x1xf32>
    %24 = tpu.iota {dimensions = array<i32: 1>} : vector<8x32xi32>
    %25 = vector.extract_strided_slice %4 {offsets = [0, 0], sizes = [8, 1], strides = [1, 1]} : vector<8x3xf32> to vector<8x1xf32>
    %26 = arith.fptosi %25 : vector<8x1xf32> to vector<8x1xi32>
    %27 = vector.extract_strided_slice %4 {offsets = [0, 1], sizes = [8, 1], strides = [1, 1]} : vector<8x3xf32> to vector<8x1xf32>
    %28 = arith.fptosi %27 : vector<8x1xf32> to vector<8x1xi32>
    %29 = vector.extract_strided_slice %4 {offsets = [0, 2], sizes = [8, 1], strides = [1, 1]} : vector<8x3xf32> to vector<8x1xf32>
    %30 = vector.broadcast %26 : vector<8x1xi32> to vector<8x32xi32>
    %31 = arith.cmpi eq, %24, %30 : vector<8x32xi32>
    %cst_7 = arith.constant 0.000000e+00 : f32
    %32 = vector.broadcast %cst_7 : f32 to vector<8x32xf32>
    %33 = arith.select %31, %14, %32 : vector<8x32xi1>, vector<8x32xf32>
    %cst_8 = arith.constant dense<0.000000e+00> : vector<8xf32>
    %34 = vector.multi_reduction <add>, %33, %cst_8 [1] : vector<8x32xf32> to vector<8xf32>
    %35 = vector.shape_cast %34 : vector<8xf32> to vector<8x1xf32>
    %36 = vector.broadcast %28 : vector<8x1xi32> to vector<8x32xi32>
    %37 = arith.cmpi eq, %24, %36 : vector<8x32xi32>
    %cst_9 = arith.constant 0.000000e+00 : f32
    %38 = vector.broadcast %cst_9 : f32 to vector<8x32xf32>
    %39 = arith.select %37, %14, %38 : vector<8x32xi1>, vector<8x32xf32>
    %cst_10 = arith.constant dense<0.000000e+00> : vector<8xf32>
    %40 = vector.multi_reduction <add>, %39, %cst_10 [1] : vector<8x32xf32> to vector<8xf32>
    %41 = vector.shape_cast %40 : vector<8xf32> to vector<8x1xf32>
    %42 = arith.extui %10 : vector<8x1xi1> to vector<8x1xi32>
    %43 = arith.sitofp %42 : vector<8x1xi32> to vector<8x1xf32>
    %c0_11 = arith.constant 0 : index
    %44 = memref.load %arg4[%c0_11] : memref<3xf32, #tpu.memory_space<smem>>
    %45 = arith.subf %23, %35 : vector<8x1xf32>
    %46 = arith.mulf %45, %43 : vector<8x1xf32>
    %47 = vector.shape_cast %46 : vector<8x1xf32> to vector<1x8x1xf32>
    %cst_12 = arith.constant dense<0.000000e+00> : vector<1xf32>
    %48 = vector.multi_reduction <add>, %47, %cst_12 [1, 2] : vector<1x8x1xf32> to vector<1xf32>
    %49 = vector.shape_cast %48 : vector<1xf32> to vector<1x1x1xf32>
    %50 = vector.extract %49[0, 0, 0] : f32 from vector<1x1x1xf32>
    %51 = arith.addf %44, %50 : f32
    %c0_13 = arith.constant 0 : index
    %52 = memref.load %arg4[%c0_13] : memref<3xf32, #tpu.memory_space<smem>>
    memref.store %51, %arg4[%c0_13] : memref<3xf32, #tpu.memory_space<smem>>
    %c1 = arith.constant 1 : index
    %53 = memref.load %arg4[%c1] : memref<3xf32, #tpu.memory_space<smem>>
    %54 = arith.subf %23, %41 : vector<8x1xf32>
    %55 = arith.mulf %54, %43 : vector<8x1xf32>
    %56 = vector.shape_cast %55 : vector<8x1xf32> to vector<1x8x1xf32>
    %cst_14 = arith.constant dense<0.000000e+00> : vector<1xf32>
    %57 = vector.multi_reduction <add>, %56, %cst_14 [1, 2] : vector<1x8x1xf32> to vector<1xf32>
    %58 = vector.shape_cast %57 : vector<1xf32> to vector<1x1x1xf32>
    %59 = vector.extract %58[0, 0, 0] : f32 from vector<1x1x1xf32>
    %60 = arith.addf %53, %59 : f32
    %c1_15 = arith.constant 1 : index
    %61 = memref.load %arg4[%c1_15] : memref<3xf32, #tpu.memory_space<smem>>
    memref.store %60, %arg4[%c1_15] : memref<3xf32, #tpu.memory_space<smem>>
    %c2 = arith.constant 2 : index
    %62 = memref.load %arg4[%c2] : memref<3xf32, #tpu.memory_space<smem>>
    %63 = arith.mulf %29, %43 : vector<8x1xf32>
    %64 = vector.shape_cast %63 : vector<8x1xf32> to vector<1x8x1xf32>
    %cst_16 = arith.constant dense<0.000000e+00> : vector<1xf32>
    %65 = vector.multi_reduction <add>, %64, %cst_16 [1, 2] : vector<1x8x1xf32> to vector<1xf32>
    %66 = vector.shape_cast %65 : vector<1xf32> to vector<1x1x1xf32>
    %67 = vector.extract %66[0, 0, 0] : f32 from vector<1x1x1xf32>
    %68 = arith.addf %62, %67 : f32
    %c2_17 = arith.constant 2 : index
    %69 = memref.load %arg4[%c2_17] : memref<3xf32, #tpu.memory_space<smem>>
    memref.store %68, %arg4[%c2_17] : memref<3xf32, #tpu.memory_space<smem>>
    %c0_i32_18 = arith.constant 0 : i32
    %70 = arith.cmpi eq, %arg0, %c0_i32_18 : i32
    %71 = arith.extui %70 : i1 to i32
    %c0_i32_19 = arith.constant 0 : i32
    %72 = arith.cmpi ne, %71, %c0_i32_19 : i32
    scf.if %72 {
      %c0_20 = arith.constant 0 : index
      %73 = memref.load %arg4[%c0_20] : memref<3xf32, #tpu.memory_space<smem>>
      %cst_21 = arith.constant 1.250000e-01 : f32
      %74 = arith.mulf %73, %cst_21 : f32
      %c1_22 = arith.constant 1 : index
      %75 = memref.load %arg4[%c1_22] : memref<3xf32, #tpu.memory_space<smem>>
      %cst_23 = arith.constant 1.250000e-01 : f32
      %76 = arith.mulf %75, %cst_23 : f32
      %c2_24 = arith.constant 2 : index
      %77 = memref.load %arg4[%c2_24] : memref<3xf32, #tpu.memory_space<smem>>
      %cst_25 = arith.constant 1.250000e-01 : f32
      %78 = arith.mulf %77, %cst_25 : f32
      %79 = arith.mulf %74, %78 : f32
      %cst_26 = arith.constant 1.000000e+00 : f32
      %80 = arith.subf %cst_26, %78 : f32
      %81 = arith.mulf %76, %80 : f32
      %82 = arith.addf %79, %81 : f32
      %c0_27 = arith.constant 0 : index
      %c0_28 = arith.constant 0 : index
      %83 = memref.load %arg3[%c0_27, %c0_28] : memref<1x1xf32, #tpu.memory_space<smem>>
      memref.store %82, %arg3[%c0_27, %c0_28] : memref<1x1xf32, #tpu.memory_space<smem>>
    } else {
    }
    return
  }
  func.func @transform_0(%arg0: i32) -> (i32, i32) {
    %c0_i32 = arith.constant 0 : i32
    %c0_i32_0 = arith.constant 0 : i32
    return %arg0, %c0_i32 : i32, i32
  }
  func.func @transform_1(%arg0: i32) -> (i32, i32) {
    %c0_i32 = arith.constant 0 : i32
    %c0_i32_0 = arith.constant 0 : i32
    return %arg0, %c0_i32 : i32, i32
  }
  func.func @transform_2(%arg0: i32) -> (i32, i32) {
    %c0_i32 = arith.constant 0 : i32
    %c0_i32_0 = arith.constant 0 : i32
    %c0_i32_1 = arith.constant 0 : i32
    return %c0_i32, %c0_i32_0 : i32, i32
  }
}

</mosaic_0001>

<llo_original>
// kernel: tpu_custom_call.1
$region0: #{tpu_custom_call.1}
  #allocation0 [shape = 'u32[]', space=smem, size = 0x4, offset = 0x4, fixed_abs, tag = 'smem constant byte address 0x4 - core index']
  #allocation1 [shape = 'u32[72,128]{1,0:T(1,128)}', space=vmem, size = 0x9000, scoped, tag = 'internal scratch']
  #allocation2 [shape = 'f32[3]{0:T(128)}', space=smem, size = 0x200, scoped, tag = 'scratch operand']
  %s0 = inlined_call_operand.vmem [shape: f32[8,32], index: 0, kind: input, shape index: {}]
  %s1 = inlined_call_operand.vmem [shape: f32[8,3], index: 1, kind: input, shape index: {}]
  %s2 = inlined_call_operand.hbm [shape: f32[1,1], index: 2, kind: output, shape index: {}]
  %s3 = sld [smem:[#allocation0]]
  $region26: #{tpu_custom_call.1} parent=0
    _
  %s5 = ssub.s32 1, %s3
  %s6 = scalar_select 0, %s5, %s3
  $region1: #{tpu_custom_call.1} parent=0
    #allocation3 [shape = 'u8[512]{0}', space=smem, size = 0x200, scoped, tag = 'output window, operand 0, single buffered']
    #allocation4 [shape = 's32[1]{0}', space=sflag, size = 0x4, scoped, tag = 'scoped memory for tpu_custom_call.1']
    %7 = vsyncpa [#allocation4], 0
    // Predicated region
    $region2: #{tpu_custom_call.1} parent=1 // pred_check
      _
    $region3: #{tpu_custom_call.1} parent=1 // pred_check_branch
      %9 = sbr.rel (0) target = $region5
    $region4: #{tpu_custom_call.1} parent=1 // pred_region
      _
    $region5: #{tpu_custom_call.1} parent=1 // pred_fallthru
      _
    // Predicated region
    $region6: #{tpu_custom_call.1} parent=1 // pred_check
      _
    $region7: #{tpu_custom_call.1} parent=1 // pred_check_branch
      %11 = sbr.rel (0) target = $region9
    $region8: #{tpu_custom_call.1} parent=1 // pred_region
      _
    $region9: #{tpu_custom_call.1} parent=1 // pred_fallthru
      _
    %p12 = scmp.eq.s32.totalorder 0, 0
    // Predicated region
    $region10: #{tpu_custom_call.1} parent=1 // pred_check
      %p13 = pneg %p12
    $region11: #{tpu_custom_call.1} parent=1 // pred_check_branch
      %15 = sbr.rel (%p13) target = $region13
    $region12: #{tpu_custom_call.1} parent=1 // pred_region
      %s16 = scalar_lea.smem [#allocation2], 0
      %17 = sst [smem:[%s16]] 0.0
      %s18 = scalar_lea.smem [#allocation2], 1
      %19 = sst [smem:[%s18]] 0.0
      %s20 = scalar_lea.smem [#allocation2], 2
      %21 = sst [smem:[%s20]] 0.0
    $region13: #{tpu_custom_call.1} parent=1 // pred_fallthru
      _
    %v22 = vld [vmem:[%s0] sm:$0xff]
    %v23 = vld [vmem:[%s1] sm:$0xff]
    %v24 = vlaneseq
    %v25 = vshrl.u32 %v24, 7
    %s26 = smul.u32 0, 8
    %v27 = vstv %s26
    %v28 = vadd.s32 %v27, %v25
    %vm29 = vcmp.lt.s32.totalorder %v28, 8
    %v30 = vsel %vm29, 1, 0
    %vm31 = vcmp.eq.s32.totalorder %v30, 1
    %v32 = vsel %vm31, %v22, 0.0
    %vm33 = vcmask 261120
    %v34 = vsel %vm33, %v32, -inf
    %35 = vmax.xlane.f32.xlu0 %v34
    %v36 = vpop.xlane.xlu0 %35
    %v37 = vsub.f32 %v32, %v36
    %v38 = vmul.f32 %v37, 1.442695
    %v39 = vpow.pop %v38
    %v40 = vsel %vm33, %v39, 0.0
    %41 = vadd.xlane.f32.xlu0 %v40
    %v42 = vpop.xlane.xlu0 %41
    %v43 = vlog2.pop %v42
    %v44 = vmul.f32 %v43, 0.6931472
    %v45 = vadd.f32 %v36, %v44
    %v46 = vlaneseq
    %v47 = vand.u32 %v46, 127
    %v48 = vcvt.f32.s32.to.zero.pseudo %v23
    %49 = vset.pattern.permute.xlu0 0
    %50 = vperm.xlu0 %49, %v48
    %v51 = vpop.permute.xlu0 %50
    %vm52 = vcmp.eq.s32.totalorder %v47, %v51
    %v53 = vsel %vm52, %v32, 0.0
    %v54 = vsel %vm33, %v53, 0.0
    %55 = vadd.xlane.f32.xlu0 %v54
    %v56 = vpop.xlane.xlu0 %55
    %57 = vset.pattern.permute.xlu0 1
    %58 = vperm.xlu0 %57, %v48
    %v59 = vpop.permute.xlu0 %58
    %vm60 = vcmp.eq.s32.totalorder %v47, %v59
    %v61 = vsel %vm60, %v32, 0.0
    %v62 = vsel %vm33, %v61, 0.0
    %63 = vadd.xlane.f32.xlu0 %v62
    %v64 = vpop.xlane.xlu0 %63
    %v65 = vcvt.s32.f32 %v30
    %s66 = sld [smem:[#allocation2]]
    %v67 = vsub.f32 %v45, %v56
    %v68 = vmul.f32 %v67, %v65
    %vm69 = vcmask 7168
    %v70 = vsel %vm69, %v68, 0.0
    %71 = vadd.xlane.f32.xlu0 %v70
    %v72 = vpop.xlane.xlu0 %71
    %v73 = vrot.slane %v72, 4
    %v74 = vadd.f32 %v72, %v73
    %v75 = vrot.slane %v74, 2
    %v76 = vadd.f32 %v74, %v75
    %v77 = vrot.slane %v76, 1
    %v78 = vadd.f32 %v76, %v77
    %s79 = vtos %v78
    %s80 = sadd.f32 %s66, %s79
    %s81 = scalar_lea.smem [#allocation2], 0
    %82 = sst [smem:[%s81]] %s80
    %s83 = sld [smem:[#allocation2 + $0x1]]
    %v84 = vsub.f32 %v45, %v64
    %v85 = vmul.f32 %v84, %v65
    %v86 = vsel %vm69, %v85, 0.0
    %87 = vadd.xlane.f32.xlu0 %v86
    %v88 = vpop.xlane.xlu0 %87
    %v89 = vrot.slane %v88, 4
    %v90 = vadd.f32 %v88, %v89
    %v91 = vrot.slane %v90, 2
    %v92 = vadd.f32 %v90, %v91
    %v93 = vrot.slane %v92, 1
    %v94 = vadd.f32 %v92, %v93
    %s95 = vtos %v94
    %s96 = sadd.f32 %s83, %s95
    %s97 = scalar_lea.smem [#allocation2], 1
    %98 = sst [smem:[%s97]] %s96
    %s99 = sld [smem:[#allocation2 + $0x2]]
    %v100 = vmul.f32 %v23, %v65
    %102 = vrot.lane.b32.xlu0 %v100, 126
    %v103 = vpop.permute.xlu0 %102
    %v105 = vsel %vm69, %v103, 0.0
    %106 = vadd.xlane.f32.xlu0 %v105
    %v107 = vpop.xlane.xlu0 %106
    %v108 = vrot.slane %v107, 4
    %v109 = vadd.f32 %v107, %v108
    %v110 = vrot.slane %v109, 2
    %v111 = vadd.f32 %v109, %v110
    %v112 = vrot.slane %v111, 1
    %v113 = vadd.f32 %v111, %v112
    %s114 = vtos %v113
    %s115 = sadd.f32 %s99, %s114
    %s116 = scalar_lea.smem [#allocation2], 2
    %117 = sst [smem:[%s116]] %s115
    // Predicated region
    $region14: #{tpu_custom_call.1} parent=1 // pred_check
      %p118 = pneg %p12
    $region15: #{tpu_custom_call.1} parent=1 // pred_check_branch
      %120 = sbr.rel (%p118) target = $region17
    $region16: #{tpu_custom_call.1} parent=1 // pred_region
      %s121 = sld [smem:[#allocation2]]
      %s122 = smul.f32 %s121, 0.125
      %s123 = sld [smem:[#allocation2 + $0x1]]
      %s124 = smul.f32 %s123, 0.125
      %s125 = sld [smem:[#allocation2 + $0x2]]
      %s126 = smul.f32 %s125, 0.125
      %s127 = smul.f32 %s122, %s126
      %s128 = ssub.f32 1.0, %s126
      %s129 = smul.f32 %s124, %s128
      %s130 = sadd.f32 %s127, %s129
      %s131 = scalar_lea.smem [#allocation3], 0
      %132 = sst [smem:[%s131]] %s130
    $region17: #{tpu_custom_call.1} parent=1 // pred_fallthru
      _
    // Predicated region
    $region18: #{tpu_custom_call.1} parent=1 // pred_check
      _
    $region19: #{tpu_custom_call.1} parent=1 // pred_check_branch
      %134 = sbr.rel (0) target = $region21
    $region20: #{tpu_custom_call.1} parent=1 // pred_region
      %136 = vsyncadd [#allocation4], 0
      %s138 = sshll.u32 %s2, 4
      %s139 = int_to_ptr.hbm [resolvable:$true] %s138
      %141 = dma.smem_to_hbm [#allocation3], 16, %s139, [#allocation4]
    $region21: #{tpu_custom_call.1} parent=1 // pred_fallthru
      _
    // Predicated region
    $region22: #{tpu_custom_call.1} parent=1 // pred_check
      _
    $region23: #{tpu_custom_call.1} parent=1 // pred_check_branch
      %143 = sbr.rel (0) target = $region25
    $region24: #{tpu_custom_call.1} parent=1 // pred_region
      %145 = dma.done [#allocation4], 16
    $region25: #{tpu_custom_call.1} parent=1 // pred_fallthru
      _
    %146 = sfence
    %147 = vsyncpa [#allocation4], 1

</llo_original>
